<compile_context>
chip_gen: v5e
topology: v5e:2x2
jax: 0.10.0
libtpu: 0.0.40
codegen_flags: <defaults>
</compile_context>

<pallas_src>
import math
import functools

import jax
import jax.numpy as jnp
from jax.experimental import pallas as pl
from jax.experimental.pallas import tpu as pltpu


def _flash_attention_kernel(*refs, inv_scale, has_mask):
    if has_mask:
        q_ref, k_ref, v_ref, mask_ref, o_ref, m_sc, l_sc, acc_sc = refs
    else:
        q_ref, k_ref, v_ref, o_ref, m_sc, l_sc, acc_sc = refs
        mask_ref = None

    ki = pl.program_id(2)

    @pl.when(ki == 0)
    def _init():
        m_sc[...] = jnp.full_like(m_sc, -jnp.inf)
        l_sc[...] = jnp.zeros_like(l_sc)
        acc_sc[...] = jnp.zeros_like(acc_sc)

    # Fold the 1/sqrt(key_size) scale into Q (tq*Dk multiplies, not tq*tk).
    q = q_ref[0] * jnp.float32(inv_scale)       # (tq, Dk)
    k = k_ref[0]                                # (tk, Dk)
    v = v_ref[0]                                # (tk, Dv)

    # scores = (Q/scale) @ K^T via contraction on the shared Dk axis
    # (no explicit k.T -> no XLU transpose / extra VMEM temporary).
    s = jax.lax.dot_general(
        q, k, (((1,), (1,)), ((), ())),
        preferred_element_type=jnp.float32)     # (tq, tk)

    if has_mask:
        m = mask_ref[0]                         # (1, tk) or (tq, tk), int32
        s = jnp.where(m != 0, jnp.float32(-1e12), s)   # == masked_fill_(-1e12)

    # Online (flash) softmax update.
    m_prev = m_sc[...]                                          # (tq, 1)
    m_new = jnp.maximum(m_prev, jnp.max(s, axis=-1, keepdims=True))
    alpha = jnp.exp(m_prev - m_new)
    p = jnp.exp(s - m_new)                                      # (tq, tk)
    l_sc[...] = alpha * l_sc[...] + jnp.sum(p, axis=-1, keepdims=True)
    acc_sc[...] = alpha * acc_sc[...] + jnp.dot(
        p, v, preferred_element_type=jnp.float32)               # (tq, Dv)
    m_sc[...] = m_new

    # TODO(synk): nn.Dropout(p>0) on the probabilities would need
    # pltpu.prng_seed + pltpu.prng_random_bits masking; p=0 is the identity.

    @pl.when(ki == pl.num_programs(2) - 1)
    def _finalize():
        # Exact reciprocal: runs once per (batch, q-tile) outside the Lk loop,
        # keeping tight numerical parity with the f32 reference softmax.
        o_ref[0] = (acc_sc[...] * pl.reciprocal(l_sc[...], approx=False)
                    ).astype(o_ref.dtype)


def _pick_tile(n, candidates):
    for c in candidates:
        if n >= c and n % c == 0:
            return c
    return n  # fall back to the full extent (always divides)


def dot_attention(Q, K, V, mask_out=None, *, key_size=None, dropout=0.0):
    """Pallas implementation of DotAttention.forward (dropout=0).

    Q: [..., Lq, Dk], K: [..., Lk, Dk], V: [..., Lk, Dv]
    mask_out: optional bool/int [..., 1, Lk] or [..., Lq, Lk]; nonzero
              positions are filled with -1e12 before softmax.
    """
    assert dropout == 0.0, "only dropout=0 (identity) is implemented"
    q = jnp.asarray(Q)
    k = jnp.asarray(K)
    v = jnp.asarray(V)

    *lead, Lq, Dk = q.shape
    lead = tuple(lead)
    Lk = k.shape[-2]
    Dv = v.shape[-1]
    assert k.shape[-1] == Dk and v.shape[-2] == Lk
    B = math.prod(lead) if lead else 1

    if key_size is None:
        key_size = Dk
    inv_scale = 1.0 / math.sqrt(key_size)

    q3 = q.reshape(B, Lq, Dk)
    k3 = k.reshape(B, Lk, Dk)
    v3 = v.reshape(B, Lk, Dv)

    # Tiles: queries <= 256, keys <= 512 (f32) -> seq-length-independent VMEM
    # footprint that also fits v7x's 64 MiB VMEM with double buffering.
    tq = _pick_tile(Lq, (256, 128))
    tk = _pick_tile(Lk, (512, 256, 128))
    grid = (B, Lq // tq, Lk // tk)

    in_specs = [
        pl.BlockSpec((1, tq, Dk), lambda b, qi, ki: (b, qi, 0)),
        pl.BlockSpec((1, tk, Dk), lambda b, qi, ki: (b, ki, 0)),
        pl.BlockSpec((1, tk, Dv), lambda b, qi, ki: (b, ki, 0)),
    ]
    args = [q3, k3, v3]

    has_mask = mask_out is not None
    if has_mask:
        m = jnp.asarray(mask_out)
        if m.ndim < 2:
            raise ValueError("mask_out must have at least 2 dims")
        mq = m.shape[-2]
        if mq not in (1, Lq):
            raise ValueError("mask_out second-to-last dim must be 1 or seq_len_q")
        m3 = jnp.broadcast_to(m, lead + (mq, Lk)).reshape(B, mq, Lk)
        m3 = m3.astype(jnp.int32)
        if mq == 1:
            # Broadcastable key mask: stream only [B, 1, Lk] (no Lq x blow-up).
            in_specs.append(pl.BlockSpec((1, 1, tk), lambda b, qi, ki: (b, 0, ki)))
        else:
            in_specs.append(pl.BlockSpec((1, tq, tk), lambda b, qi, ki: (b, qi, ki)))
        args.append(m3)

    kernel = functools.partial(
        _flash_attention_kernel, inv_scale=inv_scale, has_mask=has_mask)

    out3 = pl.pallas_call(
        kernel,
        out_shape=jax.ShapeDtypeStruct((B, Lq, Dv), q.dtype),
        grid_spec=pltpu.PrefetchScalarGridSpec(
            num_scalar_prefetch=0,
            grid=grid,
            in_specs=in_specs,
            out_specs=pl.BlockSpec((1, tq, Dv), lambda b, qi, ki: (b, qi, 0)),
            scratch_shapes=[
                pltpu.VMEM((tq, 1), jnp.float32),   # running max
                pltpu.VMEM((tq, 1), jnp.float32),   # running denom
                pltpu.VMEM((tq, Dv), jnp.float32),  # output accumulator
            ],
        ),
        compiler_params=pltpu.CompilerParams(
            dimension_semantics=("parallel", "parallel", "arbitrary")),
    )(*args)

    return out3.reshape(lead + (Lq, Dv))


def _reference(Q, K, V, mask_out, key_size):
    scores = jnp.einsum("...qd,...kd->...qk", Q, K) / math.sqrt(key_size)
    if mask_out is not None:
        scores = jnp.where(mask_out, -1e12, scores)
    probs = jax.nn.softmax(scores, axis=-1)
    return jnp.einsum("...qk,...kd->...qd", probs, V)


if __name__ == "__main__":
    # --- Small shapes consistent with the module: batch=2, seq=8, key/value=32.
    B, Lq, Lk, Dk, Dv = 2, 8, 8, 32, 32
    key = jax.random.PRNGKey(0)
    kq, kk, kv, km = jax.random.split(key, 4)
    Q = jax.random.normal(kq, (B, Lq, Dk), dtype=jnp.float32)
    K = jax.random.normal(kk, (B, Lk, Dk), dtype=jnp.float32)
    V = jax.random.normal(kv, (B, Lk, Dv), dtype=jnp.float32)
    mask = jax.random.uniform(km, (B, 1, Lk)) < 0.25   # [..., 1, seq_len_k] style

    out = dot_attention(Q, K, V, mask_out=mask, key_size=Dk)
    jax.block_until_ready(out)
    ref = _reference(Q, K, V, mask, Dk)
    assert out.shape == (B, Lq, Dv)
    assert jnp.allclose(out, ref, atol=1e-4, rtol=1e-4), "mismatch (key mask)"

    # No-mask variant (separate kernel specialization, no mask DMA at all).
    out_nm = dot_attention(Q, K, V, key_size=Dk)
    ref_nm = _reference(Q, K, V, None, Dk)
    assert jnp.allclose(out_nm, ref_nm, atol=1e-4, rtol=1e-4), "mismatch (no mask)"

    # Full [B, Lq, Lk] mask variant.
    mask_full = jnp.broadcast_to(mask, (B, Lq, Lk))
    out_fm = dot_attention(Q, K, V, mask_out=mask_full, key_size=Dk)
    assert jnp.allclose(out_fm, ref, atol=1e-4, rtol=1e-4), "mismatch (full mask)"

    # Larger (still small) case that exercises the tiled flash path:
    # Lk=1024 -> two 512-wide key tiles -> online-softmax rescaling across steps.
    B2, Lq2, Lk2, D2 = 2, 256, 1024, 64
    key2 = jax.random.PRNGKey(1)
    kq2, kk2, kv2, km2 = jax.random.split(key2, 4)
    Q2 = jax.random.normal(kq2, (B2, Lq2, D2), dtype=jnp.float32)
    K2 = jax.random.normal(kk2, (B2, Lk2, D2), dtype=jnp.float32)
    V2 = jax.random.normal(kv2, (B2, Lk2, D2), dtype=jnp.float32)
    mask2 = jax.random.uniform(km2, (B2, 1, Lk2)) < 0.25
    out2 = dot_attention(Q2, K2, V2, mask_out=mask2, key_size=D2)
    jax.block_until_ready(out2)
    ref2 = _reference(Q2, K2, V2, mask2, D2)
    assert jnp.allclose(out2, ref2, atol=2e-4, rtol=2e-4), "mismatch (tiled path)"

    print("KERNEL_OK")
</pallas_src>

<mosaic_0001>
module attributes {stable_mosaic.version = 11 : i64} {
  func.func @_flash_attention_kernel(%arg0: i32, %arg1: i32, %arg2: i32, %arg3: memref<1x8x32xf32, #tpu.memory_space<vmem>>, %arg4: memref<1x8x32xf32, #tpu.memory_space<vmem>>, %arg5: memref<1x8x32xf32, #tpu.memory_space<vmem>>, %arg6: memref<1x1x8xi32, #tpu.memory_space<vmem>>, %arg7: memref<1x8x32xf32, #tpu.memory_space<vmem>>, %arg8: memref<8x1xf32, #tpu.memory_space<vmem>>, %arg9: memref<8x1xf32, #tpu.memory_space<vmem>>, %arg10: memref<8x32xf32, #tpu.memory_space<vmem>>) attributes {dimension_semantics = [#tpu.dimension_semantics<parallel>, #tpu.dimension_semantics<parallel>, #tpu.dimension_semantics<arbitrary>], iteration_bounds = array<i64: 2, 1, 1>, scalar_prefetch = 0 : i64, scratch_operands = 3 : i64, tpu.core_type = #tpu.core_type<tc>, window_params = [{transform_indices = @transform_0, window_bounds = array<i64: 1, 8, 32>}, {transform_indices = @transform_1, window_bounds = array<i64: 1, 8, 32>}, {transform_indices = @transform_2, window_bounds = array<i64: 1, 8, 32>}, {transform_indices = @transform_3, window_bounds = array<i64: 1, 1, 8>}, {transform_indices = @transform_4, window_bounds = array<i64: 1, 8, 32>}]} {
    %c0_i32 = arith.constant 0 : i32
    %0 = arith.cmpi eq, %arg2, %c0_i32 : i32
    %1 = arith.extui %0 : i1 to i32
    %c0_i32_0 = arith.constant 0 : i32
    %2 = arith.cmpi ne, %1, %c0_i32_0 : i32
    scf.if %2 {
      %cst_32 = arith.constant 0xFF800000 : f32
      %45 = vector.broadcast %cst_32 : f32 to vector<8x1xf32>
      %c0_33 = arith.constant 0 : index
      %c0_34 = arith.constant 0 : index
      %46 = vector.load %arg8[%c0_33, %c0_34] : memref<8x1xf32, #tpu.memory_space<vmem>>, vector<8x1xf32>
      tpu.vector_store %arg8[%c0_33, %c0_34], %45 {strides = array<i32>} : memref<8x1xf32, #tpu.memory_space<vmem>>, vector<8x1xf32>,
      %cst_35 = arith.constant 0.000000e+00 : f32
      %47 = vector.broadcast %cst_35 : f32 to vector<8x1xf32>
      %c0_36 = arith.constant 0 : index
      %c0_37 = arith.constant 0 : index
      %48 = vector.load %arg9[%c0_36, %c0_37] : memref<8x1xf32, #tpu.memory_space<vmem>>, vector<8x1xf32>
      tpu.vector_store %arg9[%c0_36, %c0_37], %47 {strides = array<i32>} : memref<8x1xf32, #tpu.memory_space<vmem>>, vector<8x1xf32>,
      %cst_38 = arith.constant 0.000000e+00 : f32
      %49 = vector.broadcast %cst_38 : f32 to vector<8x32xf32>
      %c0_39 = arith.constant 0 : index
      %c0_40 = arith.constant 0 : index
      %50 = vector.load %arg10[%c0_39, %c0_40] : memref<8x32xf32, #tpu.memory_space<vmem>>, vector<8x32xf32>
      tpu.vector_store %arg10[%c0_39, %c0_40], %49 {strides = array<i32>} : memref<8x32xf32, #tpu.memory_space<vmem>>, vector<8x32xf32>,
    } else {
    }
    %c0 = arith.constant 0 : index
    %c0_1 = arith.constant 0 : index
    %c0_2 = arith.constant 0 : index
    %3 = vector.load %arg3[%c0, %c0_1, %c0_2] : memref<1x8x32xf32, #tpu.memory_space<vmem>>, vector<1x8x32xf32>
    %4 = vector.shape_cast %3 : vector<1x8x32xf32> to vector<8x32xf32>
    %cst = arith.constant 0.176776692 : f32
    %5 = vector.broadcast %cst : f32 to vector<8x32xf32>
    %6 = arith.mulf %4, %5 : vector<8x32xf32>
    %c0_3 = arith.constant 0 : index
    %c0_4 = arith.constant 0 : index
    %c0_5 = arith.constant 0 : index
    %7 = vector.load %arg4[%c0_3, %c0_4, %c0_5] : memref<1x8x32xf32, #tpu.memory_space<vmem>>, vector<1x8x32xf32>
    %8 = vector.shape_cast %7 : vector<1x8x32xf32> to vector<8x32xf32>
    %c0_6 = arith.constant 0 : index
    %c0_7 = arith.constant 0 : index
    %c0_8 = arith.constant 0 : index
    %9 = vector.load %arg5[%c0_6, %c0_7, %c0_8] : memref<1x8x32xf32, #tpu.memory_space<vmem>>, vector<1x8x32xf32>
    %10 = vector.shape_cast %9 : vector<1x8x32xf32> to vector<8x32xf32>
    %cst_9 = arith.constant dense<0.000000e+00> : vector<8x8xf32>
    %11 = tpu.matmul %6, %8, %cst_9 {dimension_numbers = #tpu.dot_dimension_numbers<[1], [1], [0], [0], [0, 0, 1, 0], [], []>} : vector<8x32xf32>, vector<8x32xf32>, vector<8x8xf32> -> vector<8x8xf32>
    %c0_10 = arith.constant 0 : index
    %c0_11 = arith.constant 0 : index
    %c0_12 = arith.constant 0 : index
    %12 = vector.load %arg6[%c0_10, %c0_11, %c0_12] : memref<1x1x8xi32, #tpu.memory_space<vmem>>, vector<1x1x8xi32>
    %13 = vector.shape_cast %12 : vector<1x1x8xi32> to vector<1x8xi32>
    %c0_i32_13 = arith.constant 0 : i32
    %14 = vector.broadcast %c0_i32_13 : i32 to vector<1x8xi32>
    %15 = arith.cmpi ne, %13, %14 : vector<1x8xi32>
    %cst_14 = arith.constant -9.99999995E+11 : f32
    %16 = vector.shape_cast %15 : vector<1x8xi1> to vector<1x8xi1>
    %17 = vector.broadcast %16 : vector<1x8xi1> to vector<8x8xi1>
    %18 = vector.broadcast %cst_14 : f32 to vector<8x8xf32>
    %19 = arith.select %17, %18, %11 : vector<8x8xi1>, vector<8x8xf32>
    %c0_15 = arith.constant 0 : index
    %c0_16 = arith.constant 0 : index
    %20 = vector.load %arg8[%c0_15, %c0_16] : memref<8x1xf32, #tpu.memory_space<vmem>>, vector<8x1xf32>
    %cst_17 = arith.constant dense<0xFF800000> : vector<8xf32>
    %21 = vector.multi_reduction <maximumf>, %19, %cst_17 [1] : vector<8x8xf32> to vector<8xf32>
    %22 = vector.shape_cast %21 : vector<8xf32> to vector<8x1xf32>
    %23 = arith.maximumf %20, %22 : vector<8x1xf32>
    %24 = arith.subf %20, %23 : vector<8x1xf32>
    %25 = math.exp %24 : vector<8x1xf32>
    %26 = vector.broadcast %23 : vector<8x1xf32> to vector<8x8xf32>
    %27 = arith.subf %19, %26 : vector<8x8xf32>
    %28 = math.exp %27 : vector<8x8xf32>
    %c0_18 = arith.constant 0 : index
    %c0_19 = arith.constant 0 : index
    %29 = vector.load %arg9[%c0_18, %c0_19] : memref<8x1xf32, #tpu.memory_space<vmem>>, vector<8x1xf32>
    %30 = arith.mulf %25, %29 : vector<8x1xf32>
    %cst_20 = arith.constant dense<0.000000e+00> : vector<8xf32>
    %31 = vector.multi_reduction <add>, %28, %cst_20 [1] : vector<8x8xf32> to vector<8xf32>
    %32 = vector.shape_cast %31 : vector<8xf32> to vector<8x1xf32>
    %33 = arith.addf %30, %32 : vector<8x1xf32>
    %c0_21 = arith.constant 0 : index
    %c0_22 = arith.constant 0 : index
    %34 = vector.load %arg9[%c0_21, %c0_22] : memref<8x1xf32, #tpu.memory_space<vmem>>, vector<8x1xf32>
    tpu.vector_store %arg9[%c0_21, %c0_22], %33 {strides = array<i32>} : memref<8x1xf32, #tpu.memory_space<vmem>>, vector<8x1xf32>,
    %c0_23 = arith.constant 0 : index
    %c0_24 = arith.constant 0 : index
    %35 = vector.load %arg10[%c0_23, %c0_24] : memref<8x32xf32, #tpu.memory_space<vmem>>, vector<8x32xf32>
    %36 = vector.broadcast %25 : vector<8x1xf32> to vector<8x32xf32>
    %37 = arith.mulf %36, %35 : vector<8x32xf32>
    %cst_25 = arith.constant dense<0.000000e+00> : vector<8x32xf32>
    %38 = tpu.matmul %28, %10, %cst_25 {dimension_numbers = #tpu.dot_dimension_numbers<[1], [0], [0], [1], [0, 0, 1, 1], [], []>} : vector<8x8xf32>, vector<8x32xf32>, vector<8x32xf32> -> vector<8x32xf32>
    %39 = arith.addf %37, %38 : vector<8x32xf32>
    %c0_26 = arith.constant 0 : index
    %c0_27 = arith.constant 0 : index
    %40 = vector.load %arg10[%c0_26, %c0_27] : memref<8x32xf32, #tpu.memory_space<vmem>>, vector<8x32xf32>
    tpu.vector_store %arg10[%c0_26, %c0_27], %39 {strides = array<i32>} : memref<8x32xf32, #tpu.memory_space<vmem>>, vector<8x32xf32>,
    %c0_28 = arith.constant 0 : index
    %c0_29 = arith.constant 0 : index
    %41 = vector.load %arg8[%c0_28, %c0_29] : memref<8x1xf32, #tpu.memory_space<vmem>>, vector<8x1xf32>
    tpu.vector_store %arg8[%c0_28, %c0_29], %23 {strides = array<i32>} : memref<8x1xf32, #tpu.memory_space<vmem>>, vector<8x1xf32>,
    %c0_i32_30 = arith.constant 0 : i32
    %42 = arith.cmpi eq, %arg2, %c0_i32_30 : i32
    %43 = arith.extui %42 : i1 to i32
    %c0_i32_31 = arith.constant 0 : i32
    %44 = arith.cmpi ne, %43, %c0_i32_31 : i32
    scf.if %44 {
      %c0_32 = arith.constant 0 : index
      %c0_33 = arith.constant 0 : index
      %45 = vector.load %arg10[%c0_32, %c0_33] : memref<8x32xf32, #tpu.memory_space<vmem>>, vector<8x32xf32>
      %c0_34 = arith.constant 0 : index
      %c0_35 = arith.constant 0 : index
      %46 = vector.load %arg9[%c0_34, %c0_35] : memref<8x1xf32, #tpu.memory_space<vmem>>, vector<8x1xf32>
      %47 = tpu.reciprocal %46 : vector<8x1xf32> -> vector<8x1xf32>
      %48 = vector.broadcast %47 : vector<8x1xf32> to vector<8x32xf32>
      %49 = arith.mulf %45, %48 : vector<8x32xf32>
      %c0_36 = arith.constant 0 : index
      %c0_37 = arith.constant 0 : index
      %c0_38 = arith.constant 0 : index
      %50 = vector.load %arg7[%c0_36, %c0_37, %c0_38] : memref<1x8x32xf32, #tpu.memory_space<vmem>>, vector<1x8x32xf32>
      %51 = vector.shape_cast %50 : vector<1x8x32xf32> to vector<8x32xf32>
      %52 = vector.shape_cast %49 : vector<8x32xf32> to vector<1x8x32xf32>
      tpu.vector_store %arg7[%c0_36, %c0_37, %c0_38], %52 {strides = array<i32>} : memref<1x8x32xf32, #tpu.memory_space<vmem>>, vector<1x8x32xf32>,
    } else {
    }
    return
  }
  func.func @transform_0(%arg0: i32, %arg1: i32, %arg2: i32) -> (i32, i32, i32) {
    %c0_i32 = arith.constant 0 : i32
    %c0_i32_0 = arith.constant 0 : i32
    return %arg0, %arg1, %c0_i32 : i32, i32, i32
  }
  func.func @transform_1(%arg0: i32, %arg1: i32, %arg2: i32) -> (i32, i32, i32) {
    %c0_i32 = arith.constant 0 : i32
    %c0_i32_0 = arith.constant 0 : i32
    return %arg0, %arg2, %c0_i32 : i32, i32, i32
  }
  func.func @transform_2(%arg0: i32, %arg1: i32, %arg2: i32) -> (i32, i32, i32) {
    %c0_i32 = arith.constant 0 : i32
    %c0_i32_0 = arith.constant 0 : i32
    return %arg0, %arg2, %c0_i32 : i32, i32, i32
  }
  func.func @transform_3(%arg0: i32, %arg1: i32, %arg2: i32) -> (i32, i32, i32) {
    %c0_i32 = arith.constant 0 : i32
    %c0_i32_0 = arith.constant 0 : i32
    return %arg0, %c0_i32, %arg2 : i32, i32, i32
  }
  func.func @transform_4(%arg0: i32, %arg1: i32, %arg2: i32) -> (i32, i32, i32) {
    %c0_i32 = arith.constant 0 : i32
    %c0_i32_0 = arith.constant 0 : i32
    return %arg0, %arg1, %c0_i32 : i32, i32, i32
  }
}

</mosaic_0001>

<llo_original>
// kernel: tpu_custom_call.1
$region0: #{tpu_custom_call.1}
  #allocation0 [shape = 'u32[]', space=smem, size = 0x4, offset = 0x4, fixed_abs, tag = 'smem constant byte address 0x4 - core index']
  #allocation1 [shape = 'u32[72,128]{1,0:T(1,128)}', space=vmem, size = 0x9000, scoped, tag = 'internal scratch']
  #allocation2 [shape = 'f32[8,1]{1,0:T(8,128)}', space=vmem, size = 0x1000, scoped, tag = 'scratch operand']
  #allocation3 [shape = 'f32[8,1]{1,0:T(8,128)}', space=vmem, size = 0x1000, scoped, tag = 'scratch operand']
  #allocation4 [shape = 'f32[8,32]{1,0:T(8,128)}', space=vmem, size = 0x1000, scoped, tag = 'scratch operand']
  %s0 = inlined_call_operand.hbm [shape: f32[2,8,32], index: 0, kind: input, shape index: {}]
  %s1 = inlined_call_operand.hbm [shape: f32[2,8,32], index: 1, kind: input, shape index: {}]
  %s2 = inlined_call_operand.hbm [shape: f32[2,8,32], index: 2, kind: input, shape index: {}]
  %s3 = inlined_call_operand.vmem [shape: s32[2,1,8], index: 3, kind: input, shape index: {}]
  %s4 = inlined_call_operand.hbm [shape: f32[2,8,32], index: 4, kind: output, shape index: {}]
  %s5 = sld [smem:[#allocation0]]
  $region69: #{tpu_custom_call.1} parent=0
    _
  %s7 = ssub.s32 1, %s5
  %s8 = scalar_select 0, %s7, %s5
  $region1: #{tpu_custom_call.1} parent=0
    #allocation5 [shape = 'u8[8192]{0}', space=vmem, size = 0x2000, scoped, tag = 'input window, operand 0']
    #allocation6 [shape = 's32[2]{0}', space=sflag, size = 0x8, scoped, tag = 'scoped memory for tpu_custom_call.1']
    #allocation7 [shape = 's32[2]{0}', space=sflag, size = 0x8, scoped, tag = 'scoped memory for tpu_custom_call.1']
    #allocation8 [shape = 'u8[8192]{0}', space=vmem, size = 0x2000, scoped, tag = 'input window, operand 1']
    #allocation9 [shape = 's32[2]{0}', space=sflag, size = 0x8, scoped, tag = 'scoped memory for tpu_custom_call.1']
    #allocation10 [shape = 'u8[8192]{0}', space=vmem, size = 0x2000, scoped, tag = 'input window, operand 2']
    #allocation11 [shape = 'u8[8192]{0}', space=vmem, size = 0x2000, scoped, tag = 'output window, operand 0']
    %9 = vsyncpa [#allocation6], 0
    %s10 = scalar_lea.sflag [#allocation6], 1
    %11 = vsyncpa %s10, 0
    %12 = vsyncpa [#allocation9], 0
    %s13 = scalar_lea.sflag [#allocation9], 1
    %14 = vsyncpa %s13, 0
    %15 = vsyncpa [#allocation7], 0
    %s16 = scalar_lea.sflag [#allocation7], 1
    %17 = vsyncpa %s16, 0
    loop: start=0, step=1, limit=4
    $region2: #{tpu_custom_call.1} parent=1 // loop_pre_header
      _
    $region3: #{tpu_custom_call.1} parent=1 // loop_header
      %s19 = sphi 0, %s23
      %p20 = scmp.ge.s32.totalorder %s19, 4
      %s26 = sphi 0, %s45
      %s27 = sphi 0, %s41
      %s28 = sphi 0, %s37
      %s29 = sphi 0, %s26
      %s30 = sphi 0, %s27
      %s31 = sphi 0, %s28
      %s32 = sphi 0, %s29
      %s33 = sphi 0, %s30
      %s34 = sphi 0, %s31
      %s50 = sphi 0, %s52
      %s53 = sphi 0, %s50
      %s54 = sphi 0, %s53
      %s70 = sphi 0, %s54
      %s78 = sphi 0, %s80
      %s81 = sphi 0, %s78
      %s82 = sphi 0, %s81
      %s98 = sphi 0, %s82
      %s106 = sphi 0, %s108
      %s109 = sphi 0, %s106
      %s110 = sphi 0, %s109
      %s126 = sphi 0, %s110
      %s134 = sphi 0, %s136
      %s137 = sphi 0, %s134
      %s138 = sphi 0, %s137
      %s154 = sphi 0, %s138
      %s162 = sphi 0, %s164
      %s165 = sphi 0, %s162
      %s166 = sphi 0, %s165
      %s182 = sphi 0, %s166
    $region4: #{tpu_custom_call.1} parent=1 // loop_header_branch
      %22 = sbr.rel (%p20) target = $region8
    $region5: #{tpu_custom_call.1} parent=1 // loop_body
      %s24 = ssub.s32 %s19, 1
      %s25 = ssub.s32 %s19, 2
      %s35 = sadd.s32 1, %s28
      %p36 = scmp.ge.s32.totalorder %s35, 1
      %s37 = scalar_select %p36, 0, %s35
      %s38 = sadd.s32 1, %s27
      %s39 = scalar_select %p36, %s38, %s27
      %p40 = scmp.ge.s32.totalorder %s39, 1
      %s41 = scalar_select %p40, 0, %s39
      %s42 = sadd.s32 1, %s26
      %s43 = scalar_select %p40, %s42, %s26
      %p44 = scmp.ge.s32.totalorder %s43, 2
      %s45 = scalar_select %p44, 0, %s43
      %s46 = ssub.s32 %s26, %s45
      %s47 = ssub.s32 %s27, %s41
      %s48 = sor.u32 %s46, %s47
      %p49 = scmp.eq.s32.totalorder %s48, 0
      %s51 = sadd.s32 %s50, 1
      %s52 = scalar_select %p49, %s50, %s51
      %p55 = pneg %p49
      %p56 = scmp.eq.s32.totalorder %s19, 1
      %p57 = por %p55, %p56
      %p58 = scmp.ne.s32.totalorder %s50, %s53
      %p59 = scmp.eq.s32.totalorder %s19, 0
      %p60 = por %p58, %p59
      %p61 = scmp.ne.s32.totalorder %s50, %s53
      %p62 = scmp.eq.s32.totalorder %s24, 1
      %p63 = por %p61, %p62
      %p64 = scmp.ne.s32.totalorder %s53, %s54
      %p65 = scmp.eq.s32.totalorder %s24, 0
      %p66 = por %p64, %p65
      %p67 = scmp.ne.s32.totalorder %s53, %s54
      %p68 = scmp.eq.s32.totalorder %s25, 1
      %p69 = por %p67, %p68
      %p71 = scmp.ne.s32.totalorder %s54, %s70
      %p72 = scmp.eq.s32.totalorder %s25, 0
      %p73 = por %p71, %p72
      %s74 = ssub.s32 %s26, %s45
      %s75 = ssub.s32 %s28, %s37
      %s76 = sor.u32 %s74, %s75
      %p77 = scmp.eq.s32.totalorder %s76, 0
      %s79 = sadd.s32 %s78, 1
      %s80 = scalar_select %p77, %s78, %s79
      %p83 = pneg %p77
      %p84 = scmp.eq.s32.totalorder %s19, 1
      %p85 = por %p83, %p84
      %p86 = scmp.ne.s32.totalorder %s78, %s81
      %p87 = scmp.eq.s32.totalorder %s19, 0
      %p88 = por %p86, %p87
      %p89 = scmp.ne.s32.totalorder %s78, %s81
      %p90 = scmp.eq.s32.totalorder %s24, 1
      %p91 = por %p89, %p90
      %p92 = scmp.ne.s32.totalorder %s81, %s82
      %p93 = scmp.eq.s32.totalorder %s24, 0
      %p94 = por %p92, %p93
      %p95 = scmp.ne.s32.totalorder %s81, %s82
      %p96 = scmp.eq.s32.totalorder %s25, 1
      %p97 = por %p95, %p96
      %p99 = scmp.ne.s32.totalorder %s82, %s98
      %p100 = scmp.eq.s32.totalorder %s25, 0
      %p101 = por %p99, %p100
      %s102 = ssub.s32 %s26, %s45
      %s103 = ssub.s32 %s28, %s37
      %s104 = sor.u32 %s102, %s103
      %p105 = scmp.eq.s32.totalorder %s104, 0
      %s107 = sadd.s32 %s106, 1
      %s108 = scalar_select %p105, %s106, %s107
      %p111 = pneg %p105
      %p112 = scmp.eq.s32.totalorder %s19, 1
      %p113 = por %p111, %p112
      %p114 = scmp.ne.s32.totalorder %s106, %s109
      %p115 = scmp.eq.s32.totalorder %s19, 0
      %p116 = por %p114, %p115
      %p117 = scmp.ne.s32.totalorder %s106, %s109
      %p118 = scmp.eq.s32.totalorder %s24, 1
      %p119 = por %p117, %p118
      %p120 = scmp.ne.s32.totalorder %s109, %s110
      %p121 = scmp.eq.s32.totalorder %s24, 0
      %p122 = por %p120, %p121
      %p123 = scmp.ne.s32.totalorder %s109, %s110
      %p124 = scmp.eq.s32.totalorder %s25, 1
      %p125 = por %p123, %p124
      %p127 = scmp.ne.s32.totalorder %s110, %s126
      %p128 = scmp.eq.s32.totalorder %s25, 0
      %p129 = por %p127, %p128
      %s130 = ssub.s32 %s26, %s45
      %s131 = ssub.s32 %s28, %s37
      %s132 = sor.u32 %s130, %s131
      %p133 = scmp.eq.s32.totalorder %s132, 0
      %s135 = sadd.s32 %s134, 1
      %s136 = scalar_select %p133, %s134, %s135
      %p139 = pneg %p133
      %p140 = scmp.eq.s32.totalorder %s19, 1
      %p141 = por %p139, %p140
      %p142 = scmp.ne.s32.totalorder %s134, %s137
      %p143 = scmp.eq.s32.totalorder %s19, 0
      %p144 = por %p142, %p143
      %p145 = scmp.ne.s32.totalorder %s134, %s137
      %p146 = scmp.eq.s32.totalorder %s24, 1
      %p147 = por %p145, %p146
      %p148 = scmp.ne.s32.totalorder %s137, %s138
      %p149 = scmp.eq.s32.totalorder %s24, 0
      %p150 = por %p148, %p149
      %p151 = scmp.ne.s32.totalorder %s137, %s138
      %p152 = scmp.eq.s32.totalorder %s25, 1
      %p153 = por %p151, %p152
      %p155 = scmp.ne.s32.totalorder %s138, %s154
      %p156 = scmp.eq.s32.totalorder %s25, 0
      %p157 = por %p155, %p156
      %s158 = ssub.s32 %s26, %s45
      %s159 = ssub.s32 %s27, %s41
      %s160 = sor.u32 %s158, %s159
      %p161 = scmp.eq.s32.totalorder %s160, 0
      %s163 = sadd.s32 %s162, 1
      %s164 = scalar_select %p161, %s162, %s163
      %p167 = pneg %p161
      %p168 = scmp.eq.s32.totalorder %s19, 1
      %p169 = por %p167, %p168
      %p170 = scmp.ne.s32.totalorder %s162, %s165
      %p171 = scmp.eq.s32.totalorder %s19, 0
      %p172 = por %p170, %p171
      %p173 = scmp.ne.s32.totalorder %s162, %s165
      %p174 = scmp.eq.s32.totalorder %s24, 1
      %p175 = por %p173, %p174
      %p176 = scmp.ne.s32.totalorder %s165, %s166
      %p177 = scmp.eq.s32.totalorder %s24, 0
      %p178 = por %p176, %p177
      %p179 = scmp.ne.s32.totalorder %s165, %s166
      %p180 = scmp.eq.s32.totalorder %s25, 1
      %p181 = por %p179, %p180
      %p183 = scmp.ne.s32.totalorder %s166, %s182
      %p184 = scmp.eq.s32.totalorder %s25, 0
      %p185 = por %p183, %p184
      %p186 = scmp.le.s32.totalorder 1, %s19
      %p187 = scmp.lt.s32.totalorder %s19, 3
      %p188 = pnand %p186, %p187
      %p189 = pneg %p188
      // Predicated region
      $region9: #{tpu_custom_call.1} parent=5 // pred_check
        _
      $region10: #{tpu_custom_call.1} parent=5 // pred_check_branch
        %191 = sbr.rel (%p188) target = $region12
      $region11: #{tpu_custom_call.1} parent=5 // pred_region
        %s192 = ssub.s32 %s19, 1
      $region12: #{tpu_custom_call.1} parent=5 // pred_fallthru
        _
      %p193 = scmp.lt.s32.totalorder %s19, 2
      // Predicated region
      $region13: #{tpu_custom_call.1} parent=5 // pred_check
        %p194 = pneg %p193
      $region14: #{tpu_custom_call.1} parent=5 // pred_check_branch
        %196 = sbr.rel (%p194) target = $region16
      $region15: #{tpu_custom_call.1} parent=5 // pred_region
        // Predicated region
        $region17: #{tpu_custom_call.1} parent=15 // pred_check
          %p197 = pneg %p60
        $region18: #{tpu_custom_call.1} parent=15 // pred_check_branch
          %199 = sbr.rel (%p197) target = $region20
        $region19: #{tpu_custom_call.1} parent=15 // pred_region
          %s200 = sand.u32 %s50, 1
          %s201 = scalar_lea.sflag [#allocation6], %s200
          %s202 = sand.u32 %s50, 1
          %s203 = smul.addr %s202, 8
          %s204 = scalar_lea.vmem [#allocation5], %s203
          %206 = vsyncadd %s201, 0
          %s207 = sadd.s32 %s27, %s26
          %s208 = smul.addr %s207, 8
          %s209 = scalar_lea.hbm %s0, %s208
          %s211 = sshll.u32 %s209, 4
          %s212 = int_to_ptr.hbm [resolvable:$true] %s211
          %s213 = sshll.u32 %s204, 4
          %s214 = int_to_ptr.vmem [resolvable:$true] %s213
          %216 = dma.hbm_to_vmem [thread:$0]  %s212, 128, %s214, %s201
        $region20: #{tpu_custom_call.1} parent=15 // pred_fallthru
          _
        // Predicated region
        $region21: #{tpu_custom_call.1} parent=15 // pred_check
          %p217 = pneg %p88
        $region22: #{tpu_custom_call.1} parent=15 // pred_check_branch
          %219 = sbr.rel (%p217) target = $region24
        $region23: #{tpu_custom_call.1} parent=15 // pred_region
          %s220 = sand.u32 %s19, 1
          %s221 = scalar_lea.sflag [#allocation9], %s220
          %s222 = sand.u32 %s78, 1
          %s223 = smul.addr %s222, 8
          %s224 = scalar_lea.vmem [#allocation8], %s223
          %226 = vsyncadd %s221, 0
          %s227 = sadd.s32 %s28, %s26
          %s228 = smul.addr %s227, 8
          %s229 = scalar_lea.hbm %s1, %s228
          %s231 = sshll.u32 %s229, 4
          %s232 = int_to_ptr.hbm [resolvable:$true] %s231
          %s233 = sshll.u32 %s224, 4
          %s234 = int_to_ptr.vmem [resolvable:$true] %s233
          %236 = dma.hbm_to_vmem [thread:$0]  %s232, 128, %s234, %s221
        $region24: #{tpu_custom_call.1} parent=15 // pred_fallthru
          _
        // Predicated region
        $region25: #{tpu_custom_call.1} parent=15 // pred_check
          %p237 = pneg %p116
        $region26: #{tpu_custom_call.1} parent=15 // pred_check_branch
          %239 = sbr.rel (%p237) target = $region28
        $region27: #{tpu_custom_call.1} parent=15 // pred_region
          %s240 = sand.u32 %s19, 1
          %s241 = scalar_lea.sflag [#allocation9], %s240
          %s242 = sand.u32 %s106, 1
          %s243 = smul.addr %s242, 8
          %s244 = scalar_lea.vmem [#allocation10], %s243
          %246 = vsyncadd %s241, 0
          %s247 = sadd.s32 %s28, %s26
          %s248 = smul.addr %s247, 8
          %s249 = scalar_lea.hbm %s2, %s248
          %s251 = sshll.u32 %s249, 4
          %s252 = int_to_ptr.hbm [resolvable:$true] %s251
          %s253 = sshll.u32 %s244, 4
          %s254 = int_to_ptr.vmem [resolvable:$true] %s253
          %256 = dma.hbm_to_vmem [thread:$0]  %s252, 128, %s254, %s241
        $region28: #{tpu_custom_call.1} parent=15 // pred_fallthru
          _
        // Predicated region
        $region29: #{tpu_custom_call.1} parent=15 // pred_check
          %p257 = pneg %p144
        $region30: #{tpu_custom_call.1} parent=15 // pred_check_branch
          %259 = sbr.rel (%p257) target = $region32
        $region31: #{tpu_custom_call.1} parent=15 // pred_region
          %p260 = scmp.lt.s32.totalorder %s26, 1
          %s261 = scalar_select %p260, %s26, 1
          %p262 = scmp.lt.s32.totalorder %s28, 0
          %s263 = scalar_select %p262, %s28, 0
          %s264 = sadd.s32 %s263, %s261
          %s265 = scalar_lea.vmem %s3, %s264
        $region32: #{tpu_custom_call.1} parent=15 // pred_fallthru
          _
      $region16: #{tpu_custom_call.1} parent=5 // pred_fallthru
        _
      %p266 = scmp.le.s32.totalorder 1, %s19
      %p267 = scmp.lt.s32.totalorder %s19, 3
      %p268 = pnand %p266, %p267
      %p269 = pneg %p268
      // Predicated region
      $region33: #{tpu_custom_call.1} parent=5 // pred_check
        _
      $region34: #{tpu_custom_call.1} parent=5 // pred_check_branch
        %271 = sbr.rel (%p268) target = $region36
      $region35: #{tpu_custom_call.1} parent=5 // pred_region
        %s272 = ssub.s32 %s19, 1
        %s273 = sand.u32 %s53, 1
        %s274 = scalar_lea.sflag [#allocation6], %s273
        %s275 = sand.u32 %s53, 1
        %s276 = smul.addr %s275, 8
        %s277 = scalar_lea.vmem [#allocation5], %s276
        // Predicated region
        $region37: #{tpu_custom_call.1} parent=35 // pred_check
          %p278 = pneg %p66
        $region38: #{tpu_custom_call.1} parent=35 // pred_check_branch
          %280 = sbr.rel (%p278) target = $region40
        $region39: #{tpu_custom_call.1} parent=35 // pred_region
          %282 = dma.done %s274, 128
        $region40: #{tpu_custom_call.1} parent=35 // pred_fallthru
          _
        %s283 = sand.u32 %s24, 1
        %s284 = scalar_lea.sflag [#allocation9], %s283
        %s285 = sand.u32 %s81, 1
        %s286 = smul.addr %s285, 8
        %s287 = scalar_lea.vmem [#allocation8], %s286
        // Predicated region
        $region41: #{tpu_custom_call.1} parent=35 // pred_check
          %p288 = pneg %p94
        $region42: #{tpu_custom_call.1} parent=35 // pred_check_branch
          %290 = sbr.rel (%p288) target = $region44
        $region43: #{tpu_custom_call.1} parent=35 // pred_region
          %292 = dma.done %s284, 128
        $region44: #{tpu_custom_call.1} parent=35 // pred_fallthru
          _
        %s293 = sand.u32 %s24, 1
        %s294 = scalar_lea.sflag [#allocation9], %s293
        %s295 = sand.u32 %s109, 1
        %s296 = smul.addr %s295, 8
        %s297 = scalar_lea.vmem [#allocation10], %s296
        // Predicated region
        $region45: #{tpu_custom_call.1} parent=35 // pred_check
          %p298 = pneg %p122
        $region46: #{tpu_custom_call.1} parent=35 // pred_check_branch
          %300 = sbr.rel (%p298) target = $region48
        $region47: #{tpu_custom_call.1} parent=35 // pred_region
          %302 = dma.done %s294, 128
        $region48: #{tpu_custom_call.1} parent=35 // pred_fallthru
          _
        %s303 = sand.u32 %s53, 1
        %s304 = scalar_lea.sflag [#allocation6], %s303
        %s305 = sand.u32 %s53, 1
        %s306 = smul.addr %s305, 8
        %s307 = scalar_lea.vmem [#allocation5], %s306
        %p308 = pneg %p66
        %p309 = pneg %p63
        %s310 = sand.u32 %s24, 1
        %s311 = scalar_lea.sflag [#allocation9], %s310
        %s312 = sand.u32 %s81, 1
        %s313 = smul.addr %s312, 8
        %s314 = scalar_lea.vmem [#allocation8], %s313
        %p315 = pneg %p94
        %p316 = pneg %p91
        %s317 = sand.u32 %s24, 1
        %s318 = scalar_lea.sflag [#allocation9], %s317
        %s319 = sand.u32 %s109, 1
        %s320 = smul.addr %s319, 8
        %s321 = scalar_lea.vmem [#allocation10], %s320
        %p322 = pneg %p122
        %p323 = pneg %p119
        %p324 = scmp.lt.s32.totalorder %s29, 1
        %s325 = scalar_select %p324, %s29, 1
        %p326 = scmp.lt.s32.totalorder %s31, 0
        %s327 = scalar_select %p326, %s31, 0
        %s328 = sadd.s32 %s327, %s325
        %s329 = scalar_lea.vmem %s3, %s328
        %p330 = pneg %p150
        %p331 = pneg %p147
        %p332 = pneg %p178
        %p333 = pneg %p175
        %s334 = sand.u32 %s165, 1
        %s335 = scalar_lea.sflag [#allocation7], %s334
        %s336 = sand.u32 %s165, 1
        %s337 = smul.addr %s336, 8
        %s338 = scalar_lea.vmem [#allocation11], %s337
        %p339 = scmp.lt.s32.totalorder %s29, 1
        %s340 = scalar_select %p339, %s29, 1
        %p341 = scmp.lt.s32.totalorder %s31, 0
        %s342 = scalar_select %p341, %s31, 0
        %s343 = sadd.s32 %s342, %s340
        %s344 = scalar_lea.vmem %s3, %s343
        %p345 = scmp.eq.s32.totalorder %s31, 0
        // Predicated region
        $region49: #{tpu_custom_call.1} parent=35 // pred_check
          %p346 = pneg %p345
        $region50: #{tpu_custom_call.1} parent=35 // pred_check_branch
          %348 = sbr.rel (%p346) target = $region52
        $region51: #{tpu_custom_call.1} parent=35 // pred_region
          %vm349 = vcmask 7168
          %350 = vst.msk [vmem:[#allocation2] sm:$0xff] %vm349, -inf
          %351 = vst.msk [vmem:[#allocation3] sm:$0xff] %vm349, 0.0
          %vm352 = vcmask 261120
          %353 = vst.msk [vmem:[#allocation4] sm:$0xff] %vm352, 0.0
        $region52: #{tpu_custom_call.1} parent=35 // pred_fallthru
          _
        %v354 = vld [vmem:[%s277] sm:$0xff]
        %v355 = vmul.f32 %v354, 0.17677669
        %v356 = vld [vmem:[%s287] sm:$0xff]
        %v357 = vld [vmem:[%s297] sm:$0xff]
        %vm358 = vcmask 261120
        %v360 = vsel %vm358, %v355, 0
        %v363 = vsel %vm358, %v356, 0
        %365 = vmatpush.xpose.msra.mxu0 0.0
        %366 = vmatpush.xpose.msra.mxu0 0.0
        %367 = vmatpush.xpose.msra.mxu0 0.0
        %368 = vmatpush.xpose.msra.mxu0 0.0
        %369 = vmatpush.xpose.msra.mxu0 0.0
        %370 = vmatpush.xpose.msra.mxu0 0.0
        %371 = vmatpush.xpose.msra.mxu0 0.0
        %372 = vmatpush.xpose.msra.mxu0 0.0
        %373 = vmatpush.xpose.msra.mxu0 0.0
        %374 = vmatpush.xpose.msra.mxu0 0.0
        %375 = vmatpush.xpose.msra.mxu0 0.0
        %376 = vmatpush.xpose.msra.mxu0 0.0
        %377 = vmatpush.xpose.msra.mxu0 0.0
        %378 = vmatpush.xpose.msra.mxu0 0.0
        %379 = vmatpush.xpose.msra.mxu0 0.0
        %380 = vmatpush.xpose.msra.mxu0 %v363
        %381 = vmatmul.f32.gmra.mxu0 %v360
        %v382 = vpop.f32.mrf.mxu0
        %v383 = vadd.f32 0.0, %v382
        %384 = vdwg.mxu0
        %v385 = vld [vmem:[%s344] sm:$0x1]
        %vm386 = vcmp.ne.s32.totalorder %v385, 0
        %v387 = vsel %vm386, 1, 0
        %v388 = vperm.slane %v387, 0
        %vm389 = vcmp.eq.s32.totalorder %v388, 1
        %v390 = vsel %vm389, -1e+12, %v383
        %v391 = vld [vmem:[#allocation2] sm:$0xff]
        %vm392 = vcmask 64512
        %v393 = vsel %vm392, %v390, -inf
        %394 = vmax.xlane.f32.xlu0 %v393
        %v395 = vpop.xlane.xlu0 %394
        %v396 = vmax.f32 %v391, %v395
        %v397 = vsub.f32 %v391, %v396
        %v398 = vmul.f32 %v397, 1.442695
        %v399 = vpow.pop %v398
        %401 = vset.pattern.permute.xlu0 0
        %402 = vperm.xlu0 %401, %v396
        %v403 = vpop.permute.xlu0 %402
        %v405 = vsub.f32 %v390, %v403
        %v406 = vmul.f32 %v405, 1.442695
        %v407 = vpow.pop %v406
        %v408 = vld [vmem:[#allocation3] sm:$0xff]
        %v409 = vmul.f32 %v399, %v408
        %v410 = vsel %vm392, %v407, 0.0
        %411 = vadd.xlane.f32.xlu0 %v410
        %v412 = vpop.xlane.xlu0 %411
        %v413 = vadd.f32 %v409, %v412
        %vm414 = vcmask 7168
        %415 = vst.msk [vmem:[#allocation3] sm:$0xff] %vm414, %v413
        %v416 = vld [vmem:[#allocation4] sm:$0xff]
        %418 = vset.pattern.permute.xlu0 0
        %419 = vperm.xlu0 %418, %v399
        %v420 = vpop.permute.xlu0 %419
        %v422 = vmul.f32 %v420, %v416
        %v424 = vsel %vm392, %v407, 0
        %426 = vmatpush.msra.mxu0 0.0
        %427 = vmatpush.msra.mxu0 0.0
        %428 = vmatpush.msra.mxu0 0.0
        %429 = vmatpush.msra.mxu0 0.0
        %430 = vmatpush.msra.mxu0 0.0
        %431 = vmatpush.msra.mxu0 0.0
        %432 = vmatpush.msra.mxu0 0.0
        %433 = vmatpush.msra.mxu0 0.0
        %434 = vmatpush.msra.mxu0 0.0
        %435 = vmatpush.msra.mxu0 0.0
        %436 = vmatpush.msra.mxu0 0.0
        %437 = vmatpush.msra.mxu0 0.0
        %438 = vmatpush.msra.mxu0 0.0
        %439 = vmatpush.msra.mxu0 0.0
        %440 = vmatpush.msra.mxu0 0.0
        %441 = vmatpush.msra.mxu0 %v357
        %442 = vmatmul.f32.gmra.mxu0 %v424
        %v443 = vpop.f32.mrf.mxu0
        %v444 = vadd.f32 0.0, %v443
        %445 = vdwg.mxu0
        %v446 = vadd.f32 %v422, %v444
        %447 = vst.msk [vmem:[#allocation4] sm:$0xff] %vm358, %v446
        %448 = vst.msk [vmem:[#allocation2] sm:$0xff] %vm414, %v396
        // Predicated region
        $region53: #{tpu_custom_call.1} parent=35 // pred_check
          %p449 = pneg %p345
        $region54: #{tpu_custom_call.1} parent=35 // pred_check_branch
          %451 = sbr.rel (%p449) target = $region56
        $region55: #{tpu_custom_call.1} parent=35 // pred_region
          %v452 = vld [vmem:[#allocation4] sm:$0xff]
          %v453 = vld [vmem:[#allocation3] sm:$0xff]
          %v454 = vrcp.pop %v453
          %v455 = vmul.f32 %v453, %v454
          %v456 = vsub.f32 1.0, %v455
          %v457 = vmul.f32 %v454, %v456
          %v458 = vadd.f32 %v454, %v457
          %vm459 = vweird.f32 %v453
          %vm460 = vweird.f32 %v454
          %vm461 = vmor %vm459, %vm460
          %v462 = vsel %vm461, %v454, %v458
          %v463 = vand.u32 2147483647, %v453
          %vm464 = vcmp.eq.f32.partialorder %v463, 8.507059e+37
          %v465 = vand.u32 %v453, 2147483648
          %v466 = vor.u32 1.1754944e-38, %v465
          %v467 = vsel %vm464, %v466, %v462
          %469 = vset.pattern.permute.xlu0 0
          %470 = vperm.xlu0 %469, %v467
          %v471 = vpop.permute.xlu0 %470
          %v473 = vmul.f32 %v452, %v471
          %474 = vst.msk [vmem:[%s338] sm:$0xff] %vm358, %v473
        $region56: #{tpu_custom_call.1} parent=35 // pred_fallthru
          _
        %s475 = sand.u32 %s165, 1
        %s476 = scalar_lea.sflag [#allocation7], %s475
        %s477 = sand.u32 %s165, 1
        %s478 = smul.addr %s477, 8
        %s479 = scalar_lea.vmem [#allocation11], %s478
        // Predicated region
        $region57: #{tpu_custom_call.1} parent=35 // pred_check
          %p480 = pneg %p175
        $region58: #{tpu_custom_call.1} parent=35 // pred_check_branch
          %482 = sbr.rel (%p480) target = $region60
        $region59: #{tpu_custom_call.1} parent=35 // pred_region
          %484 = vsyncadd %s476, 0
          %s485 = sadd.s32 %s30, %s29
          %s486 = smul.addr %s485, 8
          %s487 = scalar_lea.hbm %s4, %s486
          %s489 = sshll.u32 %s479, 4
          %s490 = int_to_ptr.vmem [resolvable:$true] %s489
          %s491 = sshll.u32 %s487, 4
          %s492 = int_to_ptr.hbm [resolvable:$true] %s491
          %494 = dma.vmem_to_hbm [thread:$0]  %s490, 128, %s492, %s476
        $region60: #{tpu_custom_call.1} parent=35 // pred_fallthru
          _
      $region36: #{tpu_custom_call.1} parent=5 // pred_fallthru
        _
      %p495 = scmp.le.s32.totalorder 2, %s19
      // Predicated region
      $region61: #{tpu_custom_call.1} parent=5 // pred_check
        %p496 = pneg %p495
      $region62: #{tpu_custom_call.1} parent=5 // pred_check_branch
        %498 = sbr.rel (%p496) target = $region64
      $region63: #{tpu_custom_call.1} parent=5 // pred_region
        %s499 = ssub.s32 %s19, 2
        // Predicated region
        $region65: #{tpu_custom_call.1} parent=63 // pred_check
          %p500 = pneg %p181
        $region66: #{tpu_custom_call.1} parent=63 // pred_check_branch
          %502 = sbr.rel (%p500) target = $region68
        $region67: #{tpu_custom_call.1} parent=63 // pred_region
          %s503 = sand.u32 %s166, 1
          %s504 = scalar_lea.sflag [#allocation7], %s503
          %s505 = sand.u32 %s166, 1
          %s506 = smul.addr %s505, 8
          %s507 = scalar_lea.vmem [#allocation11], %s506
          %509 = dma.done %s504, 128
        $region68: #{tpu_custom_call.1} parent=63 // pred_fallthru
          _
      $region64: #{tpu_custom_call.1} parent=5 // pred_fallthru
        _
    $region6: #{tpu_custom_call.1} parent=1 // loop_footer
      %s23 = sadd.s32 1, %s19
    $region7: #{tpu_custom_call.1} parent=1 // loop_footer_branch
      %18 = sbr.rel target = $region3
    $region8: #{tpu_custom_call.1} parent=1 // loop_exit
      _
    %510 = vsyncpa [#allocation6], 1
    %s511 = scalar_lea.sflag [#allocation6], 1
    %512 = vsyncpa %s511, 1
    %513 = vsyncpa [#allocation9], 1
    %s514 = scalar_lea.sflag [#allocation9], 1
    %515 = vsyncpa %s514, 1
    %516 = vsyncpa [#allocation7], 1
    %s517 = scalar_lea.sflag [#allocation7], 1
    %518 = vsyncpa %s517, 1

</llo_original>
